<compile_context>
chip_gen: v7x
topology: tpu7x:2x2x1
jax: 0.10.0
libtpu: 0.0.40
codegen_flags: <defaults>
</compile_context>

<pallas_src>
import functools

import jax
import jax.numpy as jnp
from jax.experimental import pallas as pl
from jax.experimental.pallas import tpu as pltpu

HIDDEN = 200        # hidden width from the PyTorch module
HIDDEN_PAD = 256    # lane/MXU-aligned padded hidden width (zero padding is inert)


def _round_up(n, m):
    return ((n + m - 1) // m) * m


def _mlp_kernel(mm_dtype, xy_ref, w1_ref, w2_ref, cst_ref, b3_ref, out_ref):
    """One batch tile: ReLU(ReLU(XY@W1 + b1)@W2 + b2) . w3 + b3 (lane-dense out)."""
    # Merged constant block: row 0 = b1, row 1 = b2, row 2 = w3 (as a row).
    b1 = cst_ref[0:1, :]                     # (1, HIDDEN_PAD) f32
    b2 = cst_ref[1:2, :]
    w3 = cst_ref[2:3, :]

    # In-kernel cast of the activations (VPU work hidden under the MXU).
    xy = xy_ref[...].astype(mm_dtype)        # (bt, 2D)

    # Layer 1: single fused-concat matmul, f32 accumulation on the MXU.
    h1 = jnp.dot(xy, w1_ref[...], preferred_element_type=jnp.float32)
    h1 = jnp.maximum(h1 + b1, 0.0)           # bias + ReLU in f32 (VPU)

    # Layer 2: MXU matmul (operands in mm_dtype, f32 accumulate).
    h2 = jnp.dot(h1.astype(mm_dtype), w2_ref[...],
                 preferred_element_type=jnp.float32)
    h2 = jnp.maximum(h2 + b2, 0.0)           # (bt, HIDDEN_PAD) f32

    # Layer 3 (H -> 1), emitted as a lane-dense (1, bt) row: transpose h2
    # (cheap XLU work, that unit is idle here) and contract against the w3 row.
    t = jnp.dot(w3, h2.T, preferred_element_type=jnp.float32)   # (1, bt)
    out_ref[...] = t + b3_ref[0]


@functools.partial(jax.jit, static_argnames=("batch_tile", "matmul_dtype"))
def statistics_network_forward(X, Y, params, *, batch_tile=2048,
                               matmul_dtype=jnp.bfloat16):
    """Pallas implementation of StatisticsNetwork.forward(X, Y)."""
    w1, b1, w2, b2, w3, b3 = params
    B, x_dim = X.shape
    y_dim = Y.shape[1]
    in_dim = x_dim + y_dim
    f32 = jnp.float32
    mm = matmul_dtype

    # Batch tiling (all tiles are multiples of 128 rows):
    #   B <= 512 : one grid step (no per-step pipeline overhead).
    #   B  > 512 : large tiles (default up to 2048 rows) to amortize the
    #              ~0.35 us/step fixed cost, but always >= 2 steps so the
    #              "parallel" axis can be sharded across v7x's two TensorCores.
    if B <= 512:
        bt = _round_up(max(B, 1), 128)
    else:
        bt = min(batch_tile, _round_up((B + 1) // 2, 128))
    Bp = _round_up(B, bt)
    n_tiles = Bp // bt

    # Fused layer-1 operand: XY = [X | Y]  (stays f32; cast happens in-kernel).
    XY = jnp.concatenate([X.astype(f32), Y.astype(f32)], axis=1)
    if Bp != B:
        XY = jnp.pad(XY, ((0, Bp - B), (0, 0)))

    # Weights: pad hidden 200 -> 256 with zeros (exact through ReLU), cast to
    # the MXU operand dtype.
    hp = HIDDEN_PAD - HIDDEN
    w1_p = jnp.pad(w1.astype(f32), ((0, 0), (0, hp))).astype(mm)    # (2D, 256)
    w2_p = jnp.pad(w2.astype(f32), ((0, hp), (0, hp))).astype(mm)   # (256, 256)

    # Single merged constant block: rows 0/1/2 = b1 / b2 / w3-row, rest zero.
    cst = jnp.zeros((8, HIDDEN_PAD), f32)
    cst = cst.at[0, :HIDDEN].set(b1.astype(f32).reshape(-1))
    cst = cst.at[1, :HIDDEN].set(b2.astype(f32).reshape(-1))
    cst = cst.at[2, :HIDDEN].set(w3.astype(f32).reshape(-1))
    b3_s = b3.astype(f32).reshape(1)                                # SMEM scalar

    kernel = functools.partial(_mlp_kernel, mm)

    out = pl.pallas_call(
        kernel,
        out_shape=jax.ShapeDtypeStruct((n_tiles, 1, bt), f32),
        grid_spec=pltpu.PrefetchScalarGridSpec(
            num_scalar_prefetch=0,
            grid=(n_tiles,),
            in_specs=[
                pl.BlockSpec((bt, in_dim), lambda i: (i, 0)),              # XY tile
                pl.BlockSpec((in_dim, HIDDEN_PAD), lambda i: (0, 0)),      # W1
                pl.BlockSpec((HIDDEN_PAD, HIDDEN_PAD), lambda i: (0, 0)),  # W2
                pl.BlockSpec((8, HIDDEN_PAD), lambda i: (0, 0)),           # [b1;b2;w3]
                pl.BlockSpec(memory_space=pltpu.MemorySpace.SMEM),         # b3
            ],
            out_specs=pl.BlockSpec((None, 1, bt), lambda i: (i, 0, 0)),    # lane-dense
        ),
        compiler_params=pltpu.CompilerParams(
            dimension_semantics=("parallel",),
        ),
    )(XY, w1_p, w2_p, cst, b3_s)

    # Reassemble the lane-dense tiles into the (B, 1) column the module returns.
    return out.reshape(Bp)[:B].reshape(B, 1)


def init_params(key, x_dim, y_dim):
    """Deterministic init mimicking torch.nn.Linear default (U[-1/sqrt(fan_in), +])."""
    in_dim = x_dim + y_dim
    ks = jax.random.split(key, 6)

    def lin(kw, kb, fan_in, fan_out):
        bound = 1.0 / jnp.sqrt(jnp.float32(fan_in))
        w = jax.random.uniform(kw, (fan_in, fan_out), jnp.float32, -bound, bound)
        b = jax.random.uniform(kb, (1, fan_out), jnp.float32, -bound, bound)
        return w, b

    w1, b1 = lin(ks[0], ks[1], in_dim, HIDDEN)
    w2, b2 = lin(ks[2], ks[3], HIDDEN, HIDDEN)
    w3, b3 = lin(ks[4], ks[5], HIDDEN, 1)
    return (w1, b1, w2, b2, w3, b3)


def _reference_forward(X, Y, params):
    """Pure-JAX reference (mirrors the PyTorch forward) for correctness checks."""
    w1, b1, w2, b2, w3, b3 = params
    hp = jax.lax.Precision.HIGHEST
    xy = jnp.concatenate([X, Y], axis=1)
    h1 = jnp.maximum(jnp.dot(xy, w1, precision=hp) + b1, 0.0)
    h2 = jnp.maximum(jnp.dot(h1, w2, precision=hp) + b2, 0.0)
    return jnp.dot(h2, w3, precision=hp) + b3


if __name__ == "__main__":
    key = jax.random.PRNGKey(0)
    k_param, k_x, k_y = jax.random.split(key, 3)

    batch, x_dim, y_dim = 8, 4, 4  # config.data.dimension = 4
    X = jax.random.normal(k_x, (batch, x_dim), jnp.float32)
    Y = jax.random.normal(k_y, (batch, y_dim), jnp.float32)
    params = init_params(k_param, x_dim, y_dim)
    T_ref = _reference_forward(X, Y, params)

    # Default (bf16 MXU operands, f32 accumulate) — single-tile small batch.
    T = jax.block_until_ready(statistics_network_forward(X, Y, params))
    assert T.shape == (batch, 1), T.shape
    assert jnp.allclose(T, T_ref, atol=3e-2, rtol=3e-2), "mismatch vs reference (bf16)"

    # f32 operand path — tight numerical check of the kernel structure.
    T32 = jax.block_until_ready(
        statistics_network_forward(X, Y, params, matmul_dtype=jnp.float32))
    assert jnp.allclose(T32, T_ref, atol=1e-3, rtol=1e-3), "mismatch vs reference (f32)"

    # Tiled multi-step path: B > 512 -> >= 2 grid steps, padded batch,
    # lane-dense output tiles reassembled in the wrapper.
    big_B = 600
    Xb = jax.random.normal(k_x, (big_B, x_dim), jnp.float32)
    Yb = jax.random.normal(k_y, (big_B, y_dim), jnp.float32)
    Tb = jax.block_until_ready(statistics_network_forward(Xb, Yb, params))
    Tb_ref = _reference_forward(Xb, Yb, params)
    assert Tb.shape == (big_B, 1), Tb.shape
    assert jnp.allclose(Tb, Tb_ref, atol=3e-2, rtol=3e-2), "mismatch vs reference (tiled)"

    print("KERNEL_OK")
</pallas_src>

<mosaic_0001>
module attributes {stable_mosaic.version = 11 : i64} {
  func.func @_mlp_kernel(%arg0: i32, %arg1: memref<128x8xf32, #tpu.memory_space<vmem>>, %arg2: memref<8x256xbf16, #tpu.memory_space<vmem>>, %arg3: memref<256x256xbf16, #tpu.memory_space<vmem>>, %arg4: memref<8x256xf32, #tpu.memory_space<vmem>>, %arg5: memref<1xf32, #tpu.memory_space<smem>>, %arg6: memref<1x1x128xf32, #tpu.memory_space<vmem>>) attributes {dimension_semantics = [#tpu.dimension_semantics<parallel>], iteration_bounds = array<i64: 1>, scalar_prefetch = 0 : i64, scratch_operands = 0 : i64, tpu.core_type = #tpu.core_type<tc>, window_params = [{transform_indices = @transform_0, window_bounds = array<i64: 128, 8>}, {pipeline_mode = #tpu.pipeline_mode<synchronous>, transform_indices = @transform_1, window_bounds = array<i64: 8, 256>}, {pipeline_mode = #tpu.pipeline_mode<synchronous>, transform_indices = @transform_2, window_bounds = array<i64: 256, 256>}, {pipeline_mode = #tpu.pipeline_mode<synchronous>, transform_indices = @transform_3, window_bounds = array<i64: 8, 256>}, {transform_indices = @transform_4, window_bounds = array<i64: 1>}, {transform_indices = @transform_5, window_bounds = array<i64: 1, 1, 128>}]} {
    %c0 = arith.constant 0 : index
    %c0_0 = arith.constant 0 : index
    %0 = vector.load %arg4[%c0, %c0_0] : memref<8x256xf32, #tpu.memory_space<vmem>>, vector<1x256xf32>
    %c1 = arith.constant 1 : index
    %c0_1 = arith.constant 0 : index
    %1 = vector.load %arg4[%c1, %c0_1] : memref<8x256xf32, #tpu.memory_space<vmem>>, vector<1x256xf32>
    %c2 = arith.constant 2 : index
    %c0_2 = arith.constant 0 : index
    %2 = vector.load %arg4[%c2, %c0_2] : memref<8x256xf32, #tpu.memory_space<vmem>>, vector<1x256xf32>
    %c0_3 = arith.constant 0 : index
    %c0_4 = arith.constant 0 : index
    %3 = vector.load %arg1[%c0_3, %c0_4] : memref<128x8xf32, #tpu.memory_space<vmem>>, vector<128x8xf32>
    %4 = arith.truncf %3 : vector<128x8xf32> to vector<128x8xbf16>
    %c0_5 = arith.constant 0 : index
    %c0_6 = arith.constant 0 : index
    %5 = vector.load %arg2[%c0_5, %c0_6] : memref<8x256xbf16, #tpu.memory_space<vmem>>, vector<8x256xbf16>
    %cst = arith.constant dense<0.000000e+00> : vector<128x256xf32>
    %6 = tpu.matmul %4, %5, %cst {dimension_numbers = #tpu.dot_dimension_numbers<[1], [0], [0], [1], [0, 0, 1, 1], [], []>} : vector<128x8xbf16>, vector<8x256xbf16>, vector<128x256xf32> -> vector<128x256xf32>
    %7 = vector.broadcast %0 : vector<1x256xf32> to vector<128x256xf32>
    %8 = arith.addf %6, %7 : vector<128x256xf32>
    %cst_7 = arith.constant 0.000000e+00 : f32
    %9 = vector.broadcast %cst_7 : f32 to vector<128x256xf32>
    %10 = arith.maximumf %8, %9 : vector<128x256xf32>
    %11 = arith.truncf %10 : vector<128x256xf32> to vector<128x256xbf16>
    %c0_8 = arith.constant 0 : index
    %c0_9 = arith.constant 0 : index
    %12 = vector.load %arg3[%c0_8, %c0_9] : memref<256x256xbf16, #tpu.memory_space<vmem>>, vector<256x256xbf16>
    %cst_10 = arith.constant dense<0.000000e+00> : vector<128x256xf32>
    %13 = tpu.matmul %11, %12, %cst_10 {dimension_numbers = #tpu.dot_dimension_numbers<[1], [0], [0], [1], [0, 0, 1, 1], [], []>} : vector<128x256xbf16>, vector<256x256xbf16>, vector<128x256xf32> -> vector<128x256xf32>
    %14 = vector.broadcast %1 : vector<1x256xf32> to vector<128x256xf32>
    %15 = arith.addf %13, %14 : vector<128x256xf32>
    %cst_11 = arith.constant 0.000000e+00 : f32
    %16 = vector.broadcast %cst_11 : f32 to vector<128x256xf32>
    %17 = arith.maximumf %15, %16 : vector<128x256xf32>
    %18 = tpu.transpose %17, [1, 0] : vector<128x256xf32> -> vector<256x128xf32>
    %cst_12 = arith.constant dense<0.000000e+00> : vector<1x128xf32>
    %19 = tpu.matmul %2, %18, %cst_12 {dimension_numbers = #tpu.dot_dimension_numbers<[1], [0], [0], [1], [0, 0, 1, 1], [], []>} : vector<1x256xf32>, vector<256x128xf32>, vector<1x128xf32> -> vector<1x128xf32>
    %c0_13 = arith.constant 0 : index
    %20 = memref.load %arg5[%c0_13] : memref<1xf32, #tpu.memory_space<smem>>
    %21 = vector.broadcast %20 : f32 to vector<1x128xf32>
    %22 = arith.addf %19, %21 : vector<1x128xf32>
    %c0_14 = arith.constant 0 : index
    %c0_15 = arith.constant 0 : index
    %c0_16 = arith.constant 0 : index
    %23 = vector.load %arg6[%c0_14, %c0_15, %c0_16] : memref<1x1x128xf32, #tpu.memory_space<vmem>>, vector<1x1x128xf32>
    %24 = vector.shape_cast %23 : vector<1x1x128xf32> to vector<1x128xf32>
    %25 = vector.shape_cast %22 : vector<1x128xf32> to vector<1x1x128xf32>
    tpu.vector_store %arg6[%c0_14, %c0_15, %c0_16], %25 {strides = array<i32>} : memref<1x1x128xf32, #tpu.memory_space<vmem>>, vector<1x1x128xf32>,
    return
  }
  func.func @transform_0(%arg0: i32) -> (i32, i32) {
    %c0_i32 = arith.constant 0 : i32
    %c0_i32_0 = arith.constant 0 : i32
    return %arg0, %c0_i32 : i32, i32
  }
  func.func @transform_1(%arg0: i32) -> (i32, i32) {
    %c0_i32 = arith.constant 0 : i32
    %c0_i32_0 = arith.constant 0 : i32
    %c0_i32_1 = arith.constant 0 : i32
    return %c0_i32, %c0_i32_0 : i32, i32
  }
  func.func @transform_2(%arg0: i32) -> (i32, i32) {
    %c0_i32 = arith.constant 0 : i32
    %c0_i32_0 = arith.constant 0 : i32
    %c0_i32_1 = arith.constant 0 : i32
    return %c0_i32, %c0_i32_0 : i32, i32
  }
  func.func @transform_3(%arg0: i32) -> (i32, i32) {
    %c0_i32 = arith.constant 0 : i32
    %c0_i32_0 = arith.constant 0 : i32
    %c0_i32_1 = arith.constant 0 : i32
    return %c0_i32, %c0_i32_0 : i32, i32
  }
  func.func @transform_4(%arg0: i32) -> i32 {
    %c0_i32 = arith.constant 0 : i32
    %c0_i32_0 = arith.constant 0 : i32
    return %c0_i32 : i32
  }
  func.func @transform_5(%arg0: i32) -> (i32, i32, i32) {
    %c0_i32 = arith.constant 0 : i32
    %c0_i32_0 = arith.constant 0 : i32
    %c0_i32_1 = arith.constant 0 : i32
    return %arg0, %c0_i32, %c0_i32_0 : i32, i32, i32
  }
}

</mosaic_0001>

<llo_original>
// kernel: statistics_network_forward.1
$region0: #{statistics_network_forward.1}
  #allocation0 [shape = 'u32[]', space=smem, size = 0x4, offset = 0x4, fixed_abs, tag = 'smem constant byte address 0x4 - core index']
  #allocation1 [shape = 'u32[144,128]{1,0:T(1,128)}', space=vmem, size = 0x12000, scoped, tag = 'internal scratch']
  #allocation2 [shape = 'f32[1]{0:T(128)S(6)}', space=smem, size = 0x200, scoped, tag = 'scoped memory for statistics_network_forward.1']
  %s0 = inlined_call_operand.vmem [shape: f32[128,8], index: 0, kind: input, shape index: {}]
  %s1 = inlined_call_operand.vmem [shape: bf16[8,256], index: 1, kind: input, shape index: {}]
  %s2 = inlined_call_operand.vmem [shape: bf16[256,256], index: 2, kind: input, shape index: {}]
  %s3 = inlined_call_operand.vmem [shape: f32[8,256], index: 3, kind: input, shape index: {}]
  %s4 = inlined_call_operand.<no memory space> [shape: f32[1], index: 4, kind: input, shape index: {}]
  %s5 = inlined_call_operand.vmem [shape: f32[1,1,128], index: 5, kind: output, shape index: {}]
  %s6 = sld [smem:[#allocation0]]
  $region30: #{statistics_network_forward.1} parent=0
    _
  %s8 = ssub.s32 1, %s6
  %s9 = scalar_select 0, %s8, %s6
  %10 = sst [smem:[#allocation2]] %s4
  // Predicated region
  $region2: #{statistics_network_forward.1} parent=0 // pred_check
    _
  $region3: #{statistics_network_forward.1} parent=0 // pred_check_branch
    %12 = sbr.rel (0) target = $region5
  $region4: #{statistics_network_forward.1} parent=0 // pred_region
    _
  $region5: #{statistics_network_forward.1} parent=0 // pred_fallthru
    _
  // Predicated region
  $region6: #{statistics_network_forward.1} parent=0 // pred_check
    _
  $region7: #{statistics_network_forward.1} parent=0 // pred_check_branch
    %14 = sbr.rel (0) target = $region9
  $region8: #{statistics_network_forward.1} parent=0 // pred_region
    _
  $region9: #{statistics_network_forward.1} parent=0 // pred_fallthru
    _
  // Predicated region
  $region10: #{statistics_network_forward.1} parent=0 // pred_check
    _
  $region11: #{statistics_network_forward.1} parent=0 // pred_check_branch
    %16 = sbr.rel (0) target = $region13
  $region12: #{statistics_network_forward.1} parent=0 // pred_region
    _
  $region13: #{statistics_network_forward.1} parent=0 // pred_fallthru
    _
  // Predicated region
  $region14: #{statistics_network_forward.1} parent=0 // pred_check
    _
  $region15: #{statistics_network_forward.1} parent=0 // pred_check_branch
    %18 = sbr.rel (0) target = $region17
  $region16: #{statistics_network_forward.1} parent=0 // pred_region
    _
  $region17: #{statistics_network_forward.1} parent=0 // pred_fallthru
    _
  // Predicated region
  $region18: #{statistics_network_forward.1} parent=0 // pred_check
    _
  $region19: #{statistics_network_forward.1} parent=0 // pred_check_branch
    %20 = sbr.rel (0) target = $region21
  $region20: #{statistics_network_forward.1} parent=0 // pred_region
    _
  $region21: #{statistics_network_forward.1} parent=0 // pred_fallthru
    _
  %v22 = vld [vmem:[%s3] ss:$8 sm:$0x3]
  %s23 = scalar_lea.vmem %s3, 1
  %v24 = vld [vmem:[%s23] ss:$8 sm:$0x3]
  %s25 = scalar_lea.vmem %s3, 2
  %v26 = vld [vmem:[%s25] ss:$8 sm:$0x3]
  %v27 = vld [vmem:[%s0] sm:$0xff]
  %v28 = vld [vmem:[%s0 + $0x8] sm:$0xff]
  %v29 = vld [vmem:[%s0 + $0x10] sm:$0xff]
  %v30 = vld [vmem:[%s0 + $0x18] sm:$0xff]
  %v31 = vld [vmem:[%s0 + $0x20] sm:$0xff]
  %v32 = vld [vmem:[%s0 + $0x28] sm:$0xff]
  %v33 = vld [vmem:[%s0 + $0x30] sm:$0xff]
  %v34 = vld [vmem:[%s0 + $0x38] sm:$0xff]
  %v35 = vld [vmem:[%s0 + $0x40] sm:$0xff]
  %v36 = vld [vmem:[%s0 + $0x48] sm:$0xff]
  %v37 = vld [vmem:[%s0 + $0x50] sm:$0xff]
  %v38 = vld [vmem:[%s0 + $0x58] sm:$0xff]
  %v39 = vld [vmem:[%s0 + $0x60] sm:$0xff]
  %v40 = vld [vmem:[%s0 + $0x68] sm:$0xff]
  %v41 = vld [vmem:[%s0 + $0x70] sm:$0xff]
  %v42 = vld [vmem:[%s0 + $0x78] sm:$0xff]
  %v43 = vpack.c.bf16 %v28, %v27
  %v44 = vpack.c.bf16 %v30, %v29
  %v45 = vpack.c.bf16 %v32, %v31
  %v46 = vpack.c.bf16 %v34, %v33
  %v47 = vpack.c.bf16 %v36, %v35
  %v48 = vpack.c.bf16 %v38, %v37
  %v49 = vpack.c.bf16 %v40, %v39
  %v50 = vpack.c.bf16 %v42, %v41
  %v51 = vld [vmem:[%s1] sm:$0xff]
  %v53 = vlaneseq
  %v54 = vshrl.u32 %v53, 7
  %v55 = vsub.s32 0, %v54
  %v56 = vrot.slane %v22, %v55
  %v57 = vlaneseq
  %v58 = vshrl.u32 %v57, 7
  %v59 = vsub.s32 1, %v58
  %v60 = vrot.slane %v22, %v59
  %v64 = vunpack.c.l.b16 %v51
  %v65 = vunpack.c.h.b16 %v51
  %v66 = vpack.c.b16 %v64, %v64
  %v67 = vpack.c.b16 %v65, %v65
  %vm68 = vcmask 64512
  %v70 = vsel %vm68, %v43, 0
  %v73 = vsel %vm68, %v44, 0
  %v76 = vsel %vm68, %v45, 0
  %v79 = vsel %vm68, %v46, 0
  %v82 = vsel %vm68, %v47, 0
  %v85 = vsel %vm68, %v48, 0
  %v88 = vsel %vm68, %v49, 0
  %v91 = vsel %vm68, %v50, 0
  %vm93 = vcmask 1043456
  %v95 = vsel %vm93, %v66, 0
  %v98 = vsel %vm93, %v67, 0
  %100 = vmatprep.subr.bf16.mxu0 %v98
  %101 = vmatpush1.bf16.msra.mxu0 %v95
  %102 = vmatprep.subr.bf16.mxu0 0
  %103 = vmatpush1.bf16.msra.mxu0 0
  %104 = vmatprep.subr.bf16.mxu0 0
  %105 = vmatpush1.bf16.msra.mxu0 0
  %106 = vmatprep.subr.bf16.mxu0 0
  %107 = vmatpush1.bf16.msra.mxu0 0
  %108 = vmatprep.subr.bf16.mxu0 0
  %109 = vmatpush1.bf16.msra.mxu0 0
  %110 = vmatprep.subr.bf16.mxu0 0
  %111 = vmatpush1.bf16.msra.mxu0 0
  %112 = vmatprep.subr.bf16.mxu0 0
  %113 = vmatpush1.bf16.msra.mxu0 0
  %114 = vmatprep.subr.bf16.mxu0 0
  %115 = vmatpush1.bf16.msra.mxu0 0
  %116 = vmatprep.subr.bf16.mxu0 0
  %117 = vmatpush1.bf16.msra.mxu0 0
  %118 = vmatprep.subr.bf16.mxu0 0
  %119 = vmatpush1.bf16.msra.mxu0 0
  %120 = vmatprep.subr.bf16.mxu0 0
  %121 = vmatpush1.bf16.msra.mxu0 0
  %122 = vmatprep.subr.bf16.mxu0 0
  %123 = vmatpush1.bf16.msra.mxu0 0
  %124 = vmatprep.subr.bf16.mxu0 0
  %125 = vmatpush1.bf16.msra.mxu0 0
  %126 = vmatprep.subr.bf16.mxu0 0
  %127 = vmatpush1.bf16.msra.mxu0 0
  %128 = vmatprep.subr.bf16.mxu0 0
  %129 = vmatpush1.bf16.msra.mxu0 0
  %130 = vmatprep.subr.bf16.mxu0 0
  %131 = vmatpush1.bf16.msra.mxu0 0
  %132 = vmatprep.mubr.bf16.mxu0 0
  %133 = vmatmul.mubr.bf16.gmra.mrb[0].mxu0 %v70
  %v134 = vpop.f32.mrb[0].mxu0
  %v135 = vadd.f32 %v56, %v134
  %v136 = vpop.f32.mrb[0].mxu0
  %v137 = vadd.f32 %v60, %v136
  %v138 = vpop.f32.mrb[0].mxu0
  %v139 = vadd.f32 %v56, %v138
  %v140 = vpop.f32.mrb[0].mxu0
  %v141 = vadd.f32 %v60, %v140
  %142 = vmatprep.mubr.bf16.mxu0 0
  %143 = vmatmul.mubr.bf16.gmra.mrb[0].mxu0 %v73
  %v144 = vpop.f32.mrb[0].mxu0
  %v145 = vadd.f32 %v56, %v144
  %v146 = vpop.f32.mrb[0].mxu0
  %v147 = vadd.f32 %v60, %v146
  %v148 = vpop.f32.mrb[0].mxu0
  %v149 = vadd.f32 %v56, %v148
  %v150 = vpop.f32.mrb[0].mxu0
  %v151 = vadd.f32 %v60, %v150
  %152 = vmatprep.mubr.bf16.mxu0 0
  %153 = vmatmul.mubr.bf16.gmra.mrb[0].mxu0 %v76
  %v154 = vpop.f32.mrb[0].mxu0
  %v155 = vadd.f32 %v56, %v154
  %v156 = vpop.f32.mrb[0].mxu0
  %v157 = vadd.f32 %v60, %v156
  %v158 = vpop.f32.mrb[0].mxu0
  %v159 = vadd.f32 %v56, %v158
  %v160 = vpop.f32.mrb[0].mxu0
  %v161 = vadd.f32 %v60, %v160
  %162 = vmatprep.mubr.bf16.mxu0 0
  %163 = vmatmul.mubr.bf16.gmra.mrb[0].mxu0 %v79
  %v164 = vpop.f32.mrb[0].mxu0
  %v165 = vadd.f32 %v56, %v164
  %v166 = vpop.f32.mrb[0].mxu0
  %v167 = vadd.f32 %v60, %v166
  %v168 = vpop.f32.mrb[0].mxu0
  %v169 = vadd.f32 %v56, %v168
  %v170 = vpop.f32.mrb[0].mxu0
  %v171 = vadd.f32 %v60, %v170
  %172 = vmatprep.mubr.bf16.mxu0 0
  %173 = vmatmul.mubr.bf16.gmra.mrb[0].mxu0 %v82
  %v174 = vpop.f32.mrb[0].mxu0
  %v175 = vadd.f32 %v56, %v174
  %v176 = vpop.f32.mrb[0].mxu0
  %v177 = vadd.f32 %v60, %v176
  %v178 = vpop.f32.mrb[0].mxu0
  %v179 = vadd.f32 %v56, %v178
  %v180 = vpop.f32.mrb[0].mxu0
  %v181 = vadd.f32 %v60, %v180
  %182 = vmatprep.mubr.bf16.mxu0 0
  %183 = vmatmul.mubr.bf16.gmra.mrb[0].mxu0 %v85
  %v184 = vpop.f32.mrb[0].mxu0
  %v185 = vadd.f32 %v56, %v184
  %v186 = vpop.f32.mrb[0].mxu0
  %v187 = vadd.f32 %v60, %v186
  %v188 = vpop.f32.mrb[0].mxu0
  %v189 = vadd.f32 %v56, %v188
  %v190 = vpop.f32.mrb[0].mxu0
  %v191 = vadd.f32 %v60, %v190
  %192 = vmatprep.mubr.bf16.mxu0 0
  %193 = vmatmul.mubr.bf16.gmra.mrb[0].mxu0 %v88
  %v194 = vpop.f32.mrb[0].mxu0
  %v195 = vadd.f32 %v56, %v194
  %v196 = vpop.f32.mrb[0].mxu0
  %v197 = vadd.f32 %v60, %v196
  %v198 = vpop.f32.mrb[0].mxu0
  %v199 = vadd.f32 %v56, %v198
  %v200 = vpop.f32.mrb[0].mxu0
  %v201 = vadd.f32 %v60, %v200
  %202 = vmatprep.mubr.bf16.mxu0 0
  %203 = vmatmul.mubr.bf16.gmra.mrb[0].mxu0 %v91
  %v204 = vpop.f32.mrb[0].mxu0
  %v205 = vadd.f32 %v56, %v204
  %v206 = vpop.f32.mrb[0].mxu0
  %v207 = vadd.f32 %v60, %v206
  %v208 = vpop.f32.mrb[0].mxu0
  %v209 = vadd.f32 %v56, %v208
  %v210 = vpop.f32.mrb[0].mxu0
  %v211 = vadd.f32 %v60, %v210
  %212 = vdwg.mxu0
  %v213 = vmax.f32 %v135, 0.0
  %v214 = vmax.f32 %v137, 0.0
  %v215 = vmax.f32 %v139, 0.0
  %v216 = vmax.f32 %v141, 0.0
  %v217 = vmax.f32 %v145, 0.0
  %v218 = vmax.f32 %v147, 0.0
  %v219 = vmax.f32 %v149, 0.0
  %v220 = vmax.f32 %v151, 0.0
  %v221 = vmax.f32 %v155, 0.0
  %v222 = vmax.f32 %v157, 0.0
  %v223 = vmax.f32 %v159, 0.0
  %v224 = vmax.f32 %v161, 0.0
  %v225 = vmax.f32 %v165, 0.0
  %v226 = vmax.f32 %v167, 0.0
  %v227 = vmax.f32 %v169, 0.0
  %v228 = vmax.f32 %v171, 0.0
  %v229 = vmax.f32 %v175, 0.0
  %v230 = vmax.f32 %v177, 0.0
  %v231 = vmax.f32 %v179, 0.0
  %v232 = vmax.f32 %v181, 0.0
  %v233 = vmax.f32 %v185, 0.0
  %v234 = vmax.f32 %v187, 0.0
  %v235 = vmax.f32 %v189, 0.0
  %v236 = vmax.f32 %v191, 0.0
  %v237 = vmax.f32 %v195, 0.0
  %v238 = vmax.f32 %v197, 0.0
  %v239 = vmax.f32 %v199, 0.0
  %v240 = vmax.f32 %v201, 0.0
  %v241 = vmax.f32 %v205, 0.0
  %v242 = vmax.f32 %v207, 0.0
  %v243 = vmax.f32 %v209, 0.0
  %v244 = vmax.f32 %v211, 0.0
  %v245 = vpack.c.bf16 %v215, %v213
  %v246 = vpack.c.bf16 %v216, %v214
  %v247 = vpack.c.bf16 %v219, %v217
  %v248 = vpack.c.bf16 %v220, %v218
  %v249 = vpack.c.bf16 %v223, %v221
  %v250 = vpack.c.bf16 %v224, %v222
  %v251 = vpack.c.bf16 %v227, %v225
  %v252 = vpack.c.bf16 %v228, %v226
  %v253 = vpack.c.bf16 %v231, %v229
  %v254 = vpack.c.bf16 %v232, %v230
  %v255 = vpack.c.bf16 %v235, %v233
  %v256 = vpack.c.bf16 %v236, %v234
  %v257 = vpack.c.bf16 %v239, %v237
  %v258 = vpack.c.bf16 %v240, %v238
  %v259 = vpack.c.bf16 %v243, %v241
  %v260 = vpack.c.bf16 %v244, %v242
  %v261 = vld [vmem:[%s2] sm:$0xff]
  %v262 = vld [vmem:[%s2 + $0x8] sm:$0xff]
  %v263 = vld [vmem:[%s2 + $0x10] sm:$0xff]
  %v264 = vld [vmem:[%s2 + $0x18] sm:$0xff]
  %v265 = vld [vmem:[%s2 + $0x20] sm:$0xff]
  %v266 = vld [vmem:[%s2 + $0x28] sm:$0xff]
  %v267 = vld [vmem:[%s2 + $0x30] sm:$0xff]
  %v268 = vld [vmem:[%s2 + $0x38] sm:$0xff]
  %v269 = vld [vmem:[%s2 + $0x40] sm:$0xff]
  %v270 = vld [vmem:[%s2 + $0x48] sm:$0xff]
  %v271 = vld [vmem:[%s2 + $0x50] sm:$0xff]
  %v272 = vld [vmem:[%s2 + $0x58] sm:$0xff]
  %v273 = vld [vmem:[%s2 + $0x60] sm:$0xff]
  %v274 = vld [vmem:[%s2 + $0x68] sm:$0xff]
  %v275 = vld [vmem:[%s2 + $0x70] sm:$0xff]
  %v276 = vld [vmem:[%s2 + $0x78] sm:$0xff]
  %v277 = vld [vmem:[%s2 + $0x80] sm:$0xff]
  %v278 = vld [vmem:[%s2 + $0x88] sm:$0xff]
  %v279 = vld [vmem:[%s2 + $0x90] sm:$0xff]
  %v280 = vld [vmem:[%s2 + $0x98] sm:$0xff]
  %v281 = vld [vmem:[%s2 + $0xa0] sm:$0xff]
  %v282 = vld [vmem:[%s2 + $0xa8] sm:$0xff]
  %v283 = vld [vmem:[%s2 + $0xb0] sm:$0xff]
  %v284 = vld [vmem:[%s2 + $0xb8] sm:$0xff]
  %v285 = vld [vmem:[%s2 + $0xc0] sm:$0xff]
  %v286 = vld [vmem:[%s2 + $0xc8] sm:$0xff]
  %v287 = vld [vmem:[%s2 + $0xd0] sm:$0xff]
  %v288 = vld [vmem:[%s2 + $0xd8] sm:$0xff]
  %v289 = vld [vmem:[%s2 + $0xe0] sm:$0xff]
  %v290 = vld [vmem:[%s2 + $0xe8] sm:$0xff]
  %v291 = vld [vmem:[%s2 + $0xf0] sm:$0xff]
  %v292 = vld [vmem:[%s2 + $0xf8] sm:$0xff]
  %v294 = vlaneseq
  %v295 = vshrl.u32 %v294, 7
  %v296 = vsub.s32 0, %v295
  %v297 = vrot.slane %v24, %v296
  %v298 = vlaneseq
  %v299 = vshrl.u32 %v298, 7
  %v300 = vsub.s32 1, %v299
  %v301 = vrot.slane %v24, %v300
  %v336 = vunpack.c.l.b16 %v261
  %v337 = vunpack.c.h.b16 %v261
  %v338 = vunpack.c.l.b16 %v262
  %v339 = vunpack.c.h.b16 %v262
  %v340 = vunpack.c.l.b16 %v263
  %v341 = vunpack.c.h.b16 %v263
  %v342 = vunpack.c.l.b16 %v264
  %v343 = vunpack.c.h.b16 %v264
  %v344 = vunpack.c.l.b16 %v265
  %v345 = vunpack.c.h.b16 %v265
  %v346 = vunpack.c.l.b16 %v266
  %v347 = vunpack.c.h.b16 %v266
  %v348 = vunpack.c.l.b16 %v267
  %v349 = vunpack.c.h.b16 %v267
  %v350 = vunpack.c.l.b16 %v268
  %v351 = vunpack.c.h.b16 %v268
  %v352 = vunpack.c.l.b16 %v269
  %v353 = vunpack.c.h.b16 %v269
  %v354 = vunpack.c.l.b16 %v270
  %v355 = vunpack.c.h.b16 %v270
  %v356 = vunpack.c.l.b16 %v271
  %v357 = vunpack.c.h.b16 %v271
  %v358 = vunpack.c.l.b16 %v272
  %v359 = vunpack.c.h.b16 %v272
  %v360 = vunpack.c.l.b16 %v273
  %v361 = vunpack.c.h.b16 %v273
  %v362 = vunpack.c.l.b16 %v274
  %v363 = vunpack.c.h.b16 %v274
  %v364 = vunpack.c.l.b16 %v275
  %v365 = vunpack.c.h.b16 %v275
  %v366 = vunpack.c.l.b16 %v276
  %v367 = vunpack.c.h.b16 %v276
  %v368 = vunpack.c.l.b16 %v277
  %v369 = vunpack.c.h.b16 %v277
  %v370 = vunpack.c.l.b16 %v278
  %v371 = vunpack.c.h.b16 %v278
  %v372 = vunpack.c.l.b16 %v279
  %v373 = vunpack.c.h.b16 %v279
  %v374 = vunpack.c.l.b16 %v280
  %v375 = vunpack.c.h.b16 %v280
  %v376 = vunpack.c.l.b16 %v281
  %v377 = vunpack.c.h.b16 %v281
  %v378 = vunpack.c.l.b16 %v282
  %v379 = vunpack.c.h.b16 %v282
  %v380 = vunpack.c.l.b16 %v283
  %v381 = vunpack.c.h.b16 %v283
  %v382 = vunpack.c.l.b16 %v284
  %v383 = vunpack.c.h.b16 %v284
  %v384 = vunpack.c.l.b16 %v285
  %v385 = vunpack.c.h.b16 %v285
  %v386 = vunpack.c.l.b16 %v286
  %v387 = vunpack.c.h.b16 %v286
  %v388 = vunpack.c.l.b16 %v287
  %v389 = vunpack.c.h.b16 %v287
  %v390 = vunpack.c.l.b16 %v288
  %v391 = vunpack.c.h.b16 %v288
  %v392 = vunpack.c.l.b16 %v289
  %v393 = vunpack.c.h.b16 %v289
  %v394 = vunpack.c.l.b16 %v290
  %v395 = vunpack.c.h.b16 %v290
  %v396 = vunpack.c.l.b16 %v291
  %v397 = vunpack.c.h.b16 %v291
  %v398 = vunpack.c.l.b16 %v292
  %v399 = vunpack.c.h.b16 %v292
  %v400 = vpack.c.b16 %v338, %v336
  %v401 = vpack.c.b16 %v339, %v337
  %v402 = vpack.c.b16 %v342, %v340
  %v403 = vpack.c.b16 %v343, %v341
  %v404 = vpack.c.b16 %v346, %v344
  %v405 = vpack.c.b16 %v347, %v345
  %v406 = vpack.c.b16 %v350, %v348
  %v407 = vpack.c.b16 %v351, %v349
  %v408 = vpack.c.b16 %v354, %v352
  %v409 = vpack.c.b16 %v355, %v353
  %v410 = vpack.c.b16 %v358, %v356
  %v411 = vpack.c.b16 %v359, %v357
  %v412 = vpack.c.b16 %v362, %v360
  %v413 = vpack.c.b16 %v363, %v361
  %v414 = vpack.c.b16 %v366, %v364
  %v415 = vpack.c.b16 %v367, %v365
  %v416 = vpack.c.b16 %v370, %v368
  %v417 = vpack.c.b16 %v371, %v369
  %v418 = vpack.c.b16 %v374, %v372
  %v419 = vpack.c.b16 %v375, %v373
  %v420 = vpack.c.b16 %v378, %v376
  %v421 = vpack.c.b16 %v379, %v377
  %v422 = vpack.c.b16 %v382, %v380
  %v423 = vpack.c.b16 %v383, %v381
  %v424 = vpack.c.b16 %v386, %v384
  %v425 = vpack.c.b16 %v387, %v385
  %v426 = vpack.c.b16 %v390, %v388
  %v427 = vpack.c.b16 %v391, %v389
  %v428 = vpack.c.b16 %v394, %v392
  %v429 = vpack.c.b16 %v395, %v393
  %v430 = vpack.c.b16 %v398, %v396
  %v431 = vpack.c.b16 %v399, %v397
  %464 = vmatprep.subr.bf16.mxu0 %v401
  %465 = vmatpush1.bf16.msra.mxu0 %v400
  %466 = vmatprep.subr.bf16.mxu0 %v403
  %467 = vmatpush1.bf16.msra.mxu0 %v402
  %468 = vmatprep.subr.bf16.mxu0 %v405
  %469 = vmatpush1.bf16.msra.mxu0 %v404
  %470 = vmatprep.subr.bf16.mxu0 %v407
  %471 = vmatpush1.bf16.msra.mxu0 %v406
  %472 = vmatprep.subr.bf16.mxu0 %v409
  %473 = vmatpush1.bf16.msra.mxu0 %v408
  %474 = vmatprep.subr.bf16.mxu0 %v411
  %475 = vmatpush1.bf16.msra.mxu0 %v410
  %476 = vmatprep.subr.bf16.mxu0 %v413
  %477 = vmatpush1.bf16.msra.mxu0 %v412
  %478 = vmatprep.subr.bf16.mxu0 %v415
  %479 = vmatpush1.bf16.msra.mxu0 %v414
  %480 = vmatprep.subr.bf16.mxu0 %v417
  %481 = vmatpush1.bf16.msra.mxu0 %v416
  %482 = vmatprep.subr.bf16.mxu0 %v419
  %483 = vmatpush1.bf16.msra.mxu0 %v418
  %484 = vmatprep.subr.bf16.mxu0 %v421
  %485 = vmatpush1.bf16.msra.mxu0 %v420
  %486 = vmatprep.subr.bf16.mxu0 %v423
  %487 = vmatpush1.bf16.msra.mxu0 %v422
  %488 = vmatprep.subr.bf16.mxu0 %v425
  %489 = vmatpush1.bf16.msra.mxu0 %v424
  %490 = vmatprep.subr.bf16.mxu0 %v427
  %491 = vmatpush1.bf16.msra.mxu0 %v426
  %492 = vmatprep.subr.bf16.mxu0 %v429
  %493 = vmatpush1.bf16.msra.mxu0 %v428
  %494 = vmatprep.subr.bf16.mxu0 %v431
  %495 = vmatpush1.bf16.msra.mxu0 %v430
  %496 = vmatprep.mubr.bf16.mxu0 %v246
  %497 = vmatmul.mubr.bf16.gmra.mrb[0].mxu0 %v245
  %v498 = vpop.f32.mrb[0].mxu0
  %v499 = vadd.f32 %v297, %v498
  %v500 = vpop.f32.mrb[0].mxu0
  %v501 = vadd.f32 %v301, %v500
  %v502 = vpop.f32.mrb[0].mxu0
  %v503 = vadd.f32 %v297, %v502
  %v504 = vpop.f32.mrb[0].mxu0
  %v505 = vadd.f32 %v301, %v504
  %506 = vmatprep.mubr.bf16.mxu0 %v248
  %507 = vmatmul.mubr.bf16.gmra.mrb[0].mxu0 %v247
  %v508 = vpop.f32.mrb[0].mxu0
  %v509 = vadd.f32 %v297, %v508
  %v510 = vpop.f32.mrb[0].mxu0
  %v511 = vadd.f32 %v301, %v510
  %v512 = vpop.f32.mrb[0].mxu0
  %v513 = vadd.f32 %v297, %v512
  %v514 = vpop.f32.mrb[0].mxu0
  %v515 = vadd.f32 %v301, %v514
  %516 = vmatprep.mubr.bf16.mxu0 %v250
  %517 = vmatmul.mubr.bf16.gmra.mrb[0].mxu0 %v249
  %v518 = vpop.f32.mrb[0].mxu0
  %v519 = vadd.f32 %v297, %v518
  %v520 = vpop.f32.mrb[0].mxu0
  %v521 = vadd.f32 %v301, %v520
  %v522 = vpop.f32.mrb[0].mxu0
  %v523 = vadd.f32 %v297, %v522
  %v524 = vpop.f32.mrb[0].mxu0
  %v525 = vadd.f32 %v301, %v524
  %526 = vmatprep.mubr.bf16.mxu0 %v252
  %527 = vmatmul.mubr.bf16.gmra.mrb[0].mxu0 %v251
  %v528 = vpop.f32.mrb[0].mxu0
  %v529 = vadd.f32 %v297, %v528
  %v530 = vpop.f32.mrb[0].mxu0
  %v531 = vadd.f32 %v301, %v530
  %v532 = vpop.f32.mrb[0].mxu0
  %v533 = vadd.f32 %v297, %v532
  %v534 = vpop.f32.mrb[0].mxu0
  %v535 = vadd.f32 %v301, %v534
  %536 = vmatprep.mubr.bf16.mxu0 %v254
  %537 = vmatmul.mubr.bf16.gmra.mrb[0].mxu0 %v253
  %v538 = vpop.f32.mrb[0].mxu0
  %v539 = vadd.f32 %v297, %v538
  %v540 = vpop.f32.mrb[0].mxu0
  %v541 = vadd.f32 %v301, %v540
  %v542 = vpop.f32.mrb[0].mxu0
  %v543 = vadd.f32 %v297, %v542
  %v544 = vpop.f32.mrb[0].mxu0
  %v545 = vadd.f32 %v301, %v544
  %546 = vmatprep.mubr.bf16.mxu0 %v256
  %547 = vmatmul.mubr.bf16.gmra.mrb[0].mxu0 %v255
  %v548 = vpop.f32.mrb[0].mxu0
  %v549 = vadd.f32 %v297, %v548
  %v550 = vpop.f32.mrb[0].mxu0
  %v551 = vadd.f32 %v301, %v550
  %v552 = vpop.f32.mrb[0].mxu0
  %v553 = vadd.f32 %v297, %v552
  %v554 = vpop.f32.mrb[0].mxu0
  %v555 = vadd.f32 %v301, %v554
  %556 = vmatprep.mubr.bf16.mxu0 %v258
  %557 = vmatmul.mubr.bf16.gmra.mrb[0].mxu0 %v257
  %v558 = vpop.f32.mrb[0].mxu0
  %v559 = vadd.f32 %v297, %v558
  %v560 = vpop.f32.mrb[0].mxu0
  %v561 = vadd.f32 %v301, %v560
  %v562 = vpop.f32.mrb[0].mxu0
  %v563 = vadd.f32 %v297, %v562
  %v564 = vpop.f32.mrb[0].mxu0
  %v565 = vadd.f32 %v301, %v564
  %566 = vmatprep.mubr.bf16.mxu0 %v260
  %567 = vmatmul.mubr.bf16.gmra.mrb[0].mxu0 %v259
  %v568 = vpop.f32.mrb[0].mxu0
  %v569 = vadd.f32 %v297, %v568
  %v570 = vpop.f32.mrb[0].mxu0
  %v571 = vadd.f32 %v301, %v570
  %v572 = vpop.f32.mrb[0].mxu0
  %v573 = vadd.f32 %v297, %v572
  %v574 = vpop.f32.mrb[0].mxu0
  %v575 = vadd.f32 %v301, %v574
  %576 = vdwg.mxu0
  %v577 = vmax.f32 %v499, 0.0
  %v578 = vmax.f32 %v501, 0.0
  %v579 = vmax.f32 %v503, 0.0
  %v580 = vmax.f32 %v505, 0.0
  %v581 = vmax.f32 %v509, 0.0
  %v582 = vmax.f32 %v511, 0.0
  %v583 = vmax.f32 %v513, 0.0
  %v584 = vmax.f32 %v515, 0.0
  %v585 = vmax.f32 %v519, 0.0
  %v586 = vmax.f32 %v521, 0.0
  %v587 = vmax.f32 %v523, 0.0
  %v588 = vmax.f32 %v525, 0.0
  %v589 = vmax.f32 %v529, 0.0
  %v590 = vmax.f32 %v531, 0.0
  %v591 = vmax.f32 %v533, 0.0
  %v592 = vmax.f32 %v535, 0.0
  %v593 = vmax.f32 %v539, 0.0
  %v594 = vmax.f32 %v541, 0.0
  %v595 = vmax.f32 %v543, 0.0
  %v596 = vmax.f32 %v545, 0.0
  %v597 = vmax.f32 %v549, 0.0
  %v598 = vmax.f32 %v551, 0.0
  %v599 = vmax.f32 %v553, 0.0
  %v600 = vmax.f32 %v555, 0.0
  %v601 = vmax.f32 %v559, 0.0
  %v602 = vmax.f32 %v561, 0.0
  %v603 = vmax.f32 %v563, 0.0
  %v604 = vmax.f32 %v565, 0.0
  %v605 = vmax.f32 %v569, 0.0
  %v606 = vmax.f32 %v571, 0.0
  %v607 = vmax.f32 %v573, 0.0
  %v608 = vmax.f32 %v575, 0.0
  %s609 = sld [smem:[#allocation2]]
  %v610 = vstv %s609
  %v612 = vlaneseq
  %v613 = vshrl.u32 %v612, 7
  %v614 = vsub.s32 0, %v613
  %v615 = vrot.slane %v26, %v614
  %v616 = vlaneseq
  %v617 = vshrl.u32 %v616, 7
  %v618 = vsub.s32 1, %v617
  %v619 = vrot.slane %v26, %v618
  %622 = vmatprep.subr.mxu0 %v578
  %623 = vmatpush1.xpose.msra.mxu0 %v577
  %624 = vmatprep.subr.mxu0 %v580
  %625 = vmatpush1.xpose.msra.mxu0 %v579
  %626 = vmatprep.subr.mxu0 %v582
  %627 = vmatpush1.xpose.msra.mxu0 %v581
  %628 = vmatprep.subr.mxu0 %v584
  %629 = vmatpush1.xpose.msra.mxu0 %v583
  %630 = vmatprep.subr.mxu0 %v586
  %631 = vmatpush1.xpose.msra.mxu0 %v585
  %632 = vmatprep.subr.mxu0 %v588
  %633 = vmatpush1.xpose.msra.mxu0 %v587
  %634 = vmatprep.subr.mxu0 %v590
  %635 = vmatpush1.xpose.msra.mxu0 %v589
  %636 = vmatprep.subr.mxu0 %v592
  %637 = vmatpush1.xpose.msra.mxu0 %v591
  %638 = vmatprep.subr.mxu0 %v594
  %639 = vmatpush1.xpose.msra.mxu0 %v593
  %640 = vmatprep.subr.mxu0 %v596
  %641 = vmatpush1.xpose.msra.mxu0 %v595
  %642 = vmatprep.subr.mxu0 %v598
  %643 = vmatpush1.xpose.msra.mxu0 %v597
  %644 = vmatprep.subr.mxu0 %v600
  %645 = vmatpush1.xpose.msra.mxu0 %v599
  %646 = vmatprep.subr.mxu0 %v602
  %647 = vmatpush1.xpose.msra.mxu0 %v601
  %648 = vmatprep.subr.mxu0 %v604
  %649 = vmatpush1.xpose.msra.mxu0 %v603
  %650 = vmatprep.subr.mxu0 %v606
  %651 = vmatpush1.xpose.msra.mxu0 %v605
  %652 = vmatprep.subr.mxu0 %v608
  %653 = vmatpush1.xpose.msra.mxu0 %v607
  %654 = vmatprep.subr.mxu0 0.0
  %655 = vmatpush1.xpose.msra.mxu0 0.0
  %656 = vmatprep.subr.mxu0 0.0
  %657 = vmatpush1.xpose.msra.mxu0 0.0
  %658 = vmatprep.subr.mxu0 0.0
  %659 = vmatpush1.xpose.msra.mxu0 0.0
  %660 = vmatprep.subr.mxu0 0.0
  %661 = vmatpush1.xpose.msra.mxu0 0.0
  %662 = vmatprep.subr.mxu0 0.0
  %663 = vmatpush1.xpose.msra.mxu0 0.0
  %664 = vmatprep.subr.mxu0 0.0
  %665 = vmatpush1.xpose.msra.mxu0 0.0
  %666 = vmatprep.subr.mxu0 0.0
  %667 = vmatpush1.xpose.msra.mxu0 0.0
  %668 = vmatprep.subr.mxu0 0.0
  %669 = vmatpush1.xpose.msra.mxu0 0.0
  %670 = vmatprep.subr.mxu0 0.0
  %671 = vmatpush1.xpose.msra.mxu0 0.0
  %672 = vmatprep.subr.mxu0 0.0
  %673 = vmatpush1.xpose.msra.mxu0 0.0
  %674 = vmatprep.subr.mxu0 0.0
  %675 = vmatpush1.xpose.msra.mxu0 0.0
  %676 = vmatprep.subr.mxu0 0.0
  %677 = vmatpush1.xpose.msra.mxu0 0.0
  %678 = vmatprep.subr.mxu0 0.0
  %679 = vmatpush1.xpose.msra.mxu0 0.0
  %680 = vmatprep.subr.mxu0 0.0
  %681 = vmatpush1.xpose.msra.mxu0 0.0
  %682 = vmatprep.subr.mxu0 0.0
  %683 = vmatpush1.xpose.msra.mxu0 0.0
  %684 = vmatprep.subr.mxu0 0.0
  %685 = vmatpush1.xpose.msra.mxu0 0.0
  %686 = vmatprep.mubr.f32.mxu0 %v619
  %687 = vmatmul.mubr.f32.gmra.mrb[0].mxu0 %v615
  %v688 = vpop.f32.mrb[0].mxu0
  %v689 = vadd.f32 %v610, %v688
  %v690 = vpop.f32.mrb[0].mxu0
  %691 = vdwg.mxu0
  %692 = vst [vmem:[%s5] sm:$0x1] %v689
  // Predicated region
  $region22: #{statistics_network_forward.1} parent=0 // pred_check
    _
  $region23: #{statistics_network_forward.1} parent=0 // pred_check_branch
    %694 = sbr.rel (0) target = $region25
  $region24: #{statistics_network_forward.1} parent=0 // pred_region
    _
  $region25: #{statistics_network_forward.1} parent=0 // pred_fallthru
    _
  // Predicated region
  $region26: #{statistics_network_forward.1} parent=0 // pred_check
    _
  $region27: #{statistics_network_forward.1} parent=0 // pred_check_branch
    %696 = sbr.rel (0) target = $region29
  $region28: #{statistics_network_forward.1} parent=0 // pred_region
    _
  $region29: #{statistics_network_forward.1} parent=0 // pred_fallthru
    _

</llo_original>
